<compile_context>
chip_gen: v6e
topology: v6e:2x2x1
jax: 0.10.0
libtpu: 0.0.40
codegen_flags: <defaults>
</compile_context>

<pallas_src>
import functools
import math

import jax
import jax.numpy as jnp
from jax.experimental import pallas as pl
from jax.experimental.pallas import tpu as pltpu


def _instnrm_noise_kernel(x_ref, noise_ref, o_ref, *, inv_logscale):
    # Elementwise: log(X + noise), standardize by logscale (as a multiply),
    # tanh.  log/tanh go to the EUP slot; mul/sub are single VPU ops.
    x1 = jnp.log(x_ref[...] + noise_ref[...])
    o_ref[...] = jnp.tanh(x1 * inv_logscale - 1.0).astype(o_ref.dtype)


def _instnrm_nonoise_kernel(x_ref, o_ref, *, inv_logscale):
    x1 = jnp.log(x_ref[...])
    o_ref[...] = jnp.tanh(x1 * inv_logscale - 1.0).astype(o_ref.dtype)


def _choose_tile_rows(n_rows, width, block_budget_bytes=2 * 1024 * 1024):
    """Row-tile from a byte budget (~2 MiB per block buffer).

    3 f32 streams x 2 pipeline buffers x 2 MiB = 12 MiB total, which fits the
    scoped-VMEM default on v5e/v6e/v7x with headroom for Pallas scratch.
    """
    bytes_per_row = max(int(width) * 4, 1)
    t = block_budget_bytes // bytes_per_row
    t = (t // 8) * 8
    if t >= n_rows or t < 8:
        # Single block covering the full row extent (block dim == array dim
        # is always legal, no (8,128) divisibility requirement).
        return n_rows
    return t


def inst_nrm_simple(x, noise_sample=None, *, scale=15000.0, out_dtype=None):
    """Pallas implementation of InstNrmSimple.forward.

    Args:
      x:            (N, D) float32 gene-count matrix.
      noise_sample: (N, D) float32 Poisson noise sample (precomputed glue),
                    or None to mirror the module's `noise is None` branch.
      scale:        scaling factor; logscale = log(scale).
      out_dtype:    optional output dtype (e.g. jnp.bfloat16); default x.dtype.
    Returns:
      (N, D) tanh-standardized matrix.
    """
    N, D = x.shape
    inv_logscale = 1.0 / math.log(float(scale))
    out_dtype = x.dtype if out_dtype is None else out_dtype

    # Zero-cost lane-dense working view (contiguous row-major reshape).
    total = N * D
    view = (N, D)
    for w in (512, 256, 128):
        if total % w == 0:
            view = (total // w, w)
            break
    R, W = view

    tile_rows = _choose_tile_rows(R, W)
    grid = (pl.cdiv(R, tile_rows),)
    spec = pl.BlockSpec((tile_rows, W), lambda i: (i, 0))

    x2 = x.reshape(view)
    if noise_sample is None:
        kernel = functools.partial(_instnrm_nonoise_kernel,
                                   inv_logscale=inv_logscale)
        in_specs = [spec]
        args = (x2,)
    else:
        kernel = functools.partial(_instnrm_noise_kernel,
                                   inv_logscale=inv_logscale)
        in_specs = [spec, spec]
        args = (x2, noise_sample.reshape(view))

    out = pl.pallas_call(
        kernel,
        out_shape=jax.ShapeDtypeStruct(view, out_dtype),
        grid_spec=pltpu.PrefetchScalarGridSpec(
            num_scalar_prefetch=0,
            grid=grid,
            in_specs=in_specs,
            out_specs=spec,
        ),
        compiler_params=pltpu.CompilerParams(
            dimension_semantics=("parallel",)),
    )(*args)
    return out.reshape(N, D)


def _reference(x, noise_sample, scale):
    logscale = jnp.log(jnp.float32(scale))
    x1 = jnp.log(x if noise_sample is None else x + noise_sample)
    return jnp.tanh((x1 - logscale) / logscale)


def _make_noise(k_randn, k_pois, shape, noise):
    lam = noise[0] + noise[1] * jax.random.normal(k_randn, shape, jnp.float32)
    lam = jnp.maximum(lam, 0.0)  # torch.poisson would error on negative rates
    return jax.random.poisson(k_pois, lam, shape).astype(jnp.float32)


if __name__ == "__main__":
    key = jax.random.PRNGKey(0)
    k_x, k_randn, k_pois = jax.random.split(key, 3)

    scale = 15000.0
    noise = (10000.0, 1000.0)

    # 1) Module-consistent small shape: 16 cells x 128 projected genes
    #    (lane-dense reshape path, single block).
    N, D = 16, 128
    x = jax.random.uniform(k_x, (N, D), jnp.float32, minval=100.0,
                           maxval=30000.0)
    ns = _make_noise(k_randn, k_pois, (N, D), noise)
    out = jax.block_until_ready(inst_nrm_simple(x, ns, scale=scale))
    ref = _reference(x, ns, scale)
    assert out.shape == (N, D) and out.dtype == jnp.float32
    assert jnp.allclose(out, ref, atol=1e-5, rtol=1e-5)

    # 2) Non-aligned shape: full-D block + edge handling, no pad / no slice.
    N2, D2 = 37, 200
    x2 = jax.random.uniform(k_x, (N2, D2), jnp.float32, minval=100.0,
                            maxval=30000.0)
    ns2 = _make_noise(k_randn, k_pois, (N2, D2), noise)
    out2 = jax.block_until_ready(inst_nrm_simple(x2, ns2, scale=scale))
    ref2 = _reference(x2, ns2, scale)
    assert out2.shape == (N2, D2)
    assert jnp.allclose(out2, ref2, atol=1e-5, rtol=1e-5)

    # 3) noise=None branch of the module (log -> standardize -> tanh).
    out3 = jax.block_until_ready(inst_nrm_simple(x, None, scale=scale))
    ref3 = _reference(x, None, scale)
    assert jnp.allclose(out3, ref3, atol=1e-5, rtol=1e-5)

    # 4) Larger shape to exercise the multi-step grid / edge-clipped tail.
    N4, D4 = 8192, 128
    x4 = jax.random.uniform(k_x, (N4, D4), jnp.float32, minval=100.0,
                            maxval=30000.0)
    ns4 = _make_noise(k_randn, k_pois, (N4, D4), noise)
    out4 = jax.block_until_ready(inst_nrm_simple(x4, ns4, scale=scale))
    ref4 = _reference(x4, ns4, scale)
    assert out4.shape == (N4, D4)
    assert jnp.allclose(out4, ref4, atol=1e-5, rtol=1e-5)

    print("KERNEL_OK")
</pallas_src>

<mosaic_0001>
module attributes {stable_mosaic.version = 11 : i64} {
  func.func @_instnrm_noise_kernel(%arg0: i32, %arg1: memref<4x512xf32, #tpu.memory_space<vmem>>, %arg2: memref<4x512xf32, #tpu.memory_space<vmem>>, %arg3: memref<4x512xf32, #tpu.memory_space<vmem>>) attributes {dimension_semantics = [#tpu.dimension_semantics<parallel>], iteration_bounds = array<i64: 1>, scalar_prefetch = 0 : i64, scratch_operands = 0 : i64, tpu.core_type = #tpu.core_type<tc>, window_params = [{transform_indices = @transform_0, window_bounds = array<i64: 4, 512>}, {transform_indices = @transform_1, window_bounds = array<i64: 4, 512>}, {transform_indices = @transform_2, window_bounds = array<i64: 4, 512>}]} {
    %c0 = arith.constant 0 : index
    %c0_0 = arith.constant 0 : index
    %0 = vector.load %arg1[%c0, %c0_0] : memref<4x512xf32, #tpu.memory_space<vmem>>, vector<4x512xf32>
    %c0_1 = arith.constant 0 : index
    %c0_2 = arith.constant 0 : index
    %1 = vector.load %arg2[%c0_1, %c0_2] : memref<4x512xf32, #tpu.memory_space<vmem>>, vector<4x512xf32>
    %2 = arith.addf %0, %1 : vector<4x512xf32>
    %3 = math.log %2 : vector<4x512xf32>
    %cst = arith.constant 0.10399545 : f32
    %4 = vector.broadcast %cst : f32 to vector<4x512xf32>
    %5 = arith.mulf %3, %4 : vector<4x512xf32>
    %cst_3 = arith.constant 1.000000e+00 : f32
    %6 = vector.broadcast %cst_3 : f32 to vector<4x512xf32>
    %7 = arith.subf %5, %6 : vector<4x512xf32>
    %8 = math.tanh %7 : vector<4x512xf32>
    %c0_4 = arith.constant 0 : index
    %c0_5 = arith.constant 0 : index
    %9 = vector.load %arg3[%c0_4, %c0_5] : memref<4x512xf32, #tpu.memory_space<vmem>>, vector<4x512xf32>
    tpu.vector_store %arg3[%c0_4, %c0_5], %8 {strides = array<i32>} : memref<4x512xf32, #tpu.memory_space<vmem>>, vector<4x512xf32>,
    return
  }
  func.func @transform_0(%arg0: i32) -> (i32, i32) {
    %c0_i32 = arith.constant 0 : i32
    %c0_i32_0 = arith.constant 0 : i32
    return %arg0, %c0_i32 : i32, i32
  }
  func.func @transform_1(%arg0: i32) -> (i32, i32) {
    %c0_i32 = arith.constant 0 : i32
    %c0_i32_0 = arith.constant 0 : i32
    return %arg0, %c0_i32 : i32, i32
  }
  func.func @transform_2(%arg0: i32) -> (i32, i32) {
    %c0_i32 = arith.constant 0 : i32
    %c0_i32_0 = arith.constant 0 : i32
    return %arg0, %c0_i32 : i32, i32
  }
}

</mosaic_0001>

<llo_original>
// kernel: tpu_custom_call.1
$region0: #{tpu_custom_call.1}
  #allocation0 [shape = 'u32[]', space=smem, size = 0x4, offset = 0x4, fixed_abs, tag = 'smem constant byte address 0x4 - core index']
  #allocation1 [shape = 'u32[144,128]{1,0:T(1,128)}', space=vmem, size = 0x12000, scoped, tag = 'internal scratch']
  %s0 = inlined_call_operand.hbm [shape: f32[4,512], index: 0, kind: input, shape index: {}]
  %s1 = inlined_call_operand.hbm [shape: f32[4,512], index: 1, kind: input, shape index: {}]
  %s2 = inlined_call_operand.hbm [shape: f32[4,512], index: 2, kind: output, shape index: {}]
  %s3 = sld [smem:[#allocation0]]
  $region26: #{tpu_custom_call.1} parent=0
    _
  %s5 = ssub.s32 1, %s3
  %s6 = scalar_select 0, %s5, %s3
  $region1: #{tpu_custom_call.1} parent=0
    #allocation2 [shape = 'u8[8192]{0}', space=vmem, size = 0x2000, scoped, tag = 'input window, operand 0, single buffered']
    #allocation3 [shape = 's32[1]{0}', space=sflag, size = 0x4, scoped, tag = 'scoped memory for tpu_custom_call.1']
    #allocation4 [shape = 's32[1]{0}', space=sflag, size = 0x4, scoped, tag = 'scoped memory for tpu_custom_call.1']
    #allocation5 [shape = 'u8[8192]{0}', space=vmem, size = 0x2000, scoped, tag = 'input window, operand 1, single buffered']
    #allocation6 [shape = 's32[1]{0}', space=sflag, size = 0x4, scoped, tag = 'scoped memory for tpu_custom_call.1']
    #allocation7 [shape = 'u8[8192]{0}', space=vmem, size = 0x2000, scoped, tag = 'output window, operand 0, single buffered']
    %7 = vsyncpa [#allocation3], 0
    %8 = vsyncpa [#allocation6], 0
    %9 = vsyncpa [#allocation4], 0
    // Predicated region
    $region2: #{tpu_custom_call.1} parent=1 // pred_check
      _
    $region3: #{tpu_custom_call.1} parent=1 // pred_check_branch
      %11 = sbr.rel (0) target = $region5
    $region4: #{tpu_custom_call.1} parent=1 // pred_region
      %s13 = ssub.s32 256, 256
      %14 = vsyncadd [#allocation3], %s13
      %s16 = sshll.u32 [#allocation2], 4
      %s17 = int_to_ptr.vmem [resolvable:$true] %s16
      %19 = dma.hbm_to_vmem [thread:$0]  %s0, 256, %s17, [#allocation3]
    $region5: #{tpu_custom_call.1} parent=1 // pred_fallthru
      _
    // Predicated region
    $region6: #{tpu_custom_call.1} parent=1 // pred_check
      _
    $region7: #{tpu_custom_call.1} parent=1 // pred_check_branch
      %21 = sbr.rel (0) target = $region9
    $region8: #{tpu_custom_call.1} parent=1 // pred_region
      %s23 = ssub.s32 256, 256
      %24 = vsyncadd [#allocation6], %s23
      %s26 = sshll.u32 [#allocation5], 4
      %s27 = int_to_ptr.vmem [resolvable:$true] %s26
      %29 = dma.hbm_to_vmem [thread:$0]  %s1, 256, %s27, [#allocation6]
    $region9: #{tpu_custom_call.1} parent=1 // pred_fallthru
      _
    // Predicated region
    $region10: #{tpu_custom_call.1} parent=1 // pred_check
      _
    $region11: #{tpu_custom_call.1} parent=1 // pred_check_branch
      %31 = sbr.rel (0) target = $region13
    $region12: #{tpu_custom_call.1} parent=1 // pred_region
      %32 = dma.done [#allocation3], 256
    $region13: #{tpu_custom_call.1} parent=1 // pred_fallthru
      _
    // Predicated region
    $region14: #{tpu_custom_call.1} parent=1 // pred_check
      _
    $region15: #{tpu_custom_call.1} parent=1 // pred_check_branch
      %34 = sbr.rel (0) target = $region17
    $region16: #{tpu_custom_call.1} parent=1 // pred_region
      %35 = dma.done [#allocation6], 256
    $region17: #{tpu_custom_call.1} parent=1 // pred_fallthru
      _
    %v36 = vld [vmem:[#allocation2] sm:$0xff]
    %v37 = vld [vmem:[#allocation2 + $0x8] sm:$0xff]
    %v38 = vld [vmem:[#allocation5] sm:$0xff]
    %v39 = vld [vmem:[#allocation5 + $0x8] sm:$0xff]
    %v40 = vadd.f32 %v36, %v38
    %v41 = vadd.f32 %v37, %v39
    %v42 = vlog2.pop %v40
    %v43 = vmul.f32 %v42, 0.6931472
    %v44 = vlog2.pop %v41
    %v45 = vmul.f32 %v44, 0.6931472
    %v46 = vmul.f32 %v43, 0.10399545
    %v47 = vmul.f32 %v45, 0.10399545
    %v48 = vsub.f32 %v46, 1.0
    %v49 = vsub.f32 %v47, 1.0
    %v50 = vtanh.pop %v48
    %v51 = vtanh.pop %v49
    %52 = vst [vmem:[#allocation7] sm:$0xff] %v50
    %53 = vst [vmem:[#allocation7 + $0x8] sm:$0xff] %v51
    // Predicated region
    $region18: #{tpu_custom_call.1} parent=1 // pred_check
      _
    $region19: #{tpu_custom_call.1} parent=1 // pred_check_branch
      %55 = sbr.rel (0) target = $region21
    $region20: #{tpu_custom_call.1} parent=1 // pred_region
      %s57 = ssub.s32 256, 256
      %58 = vsyncadd [#allocation4], %s57
      %s60 = sshll.u32 [#allocation7], 4
      %s61 = int_to_ptr.vmem [resolvable:$true] %s60
      %63 = dma.vmem_to_hbm [thread:$0]  %s61, 256, %s2, [#allocation4]
    $region21: #{tpu_custom_call.1} parent=1 // pred_fallthru
      _
    // Predicated region
    $region22: #{tpu_custom_call.1} parent=1 // pred_check
      _
    $region23: #{tpu_custom_call.1} parent=1 // pred_check_branch
      %65 = sbr.rel (0) target = $region25
    $region24: #{tpu_custom_call.1} parent=1 // pred_region
      %66 = dma.done [#allocation4], 256
    $region25: #{tpu_custom_call.1} parent=1 // pred_fallthru
      _
    %67 = vsyncpa [#allocation3], 1
    %68 = vsyncpa [#allocation6], 1
    %69 = vsyncpa [#allocation4], 1

</llo_original>
